<compile_context>
chip_gen: v6e
topology: v6e:2x2x1
jax: 0.10.0
libtpu: 0.0.40
codegen_flags: <defaults>
</compile_context>

<pallas_src>
import jax
import jax.numpy as jnp
from jax.experimental import pallas as pl
from jax.experimental.pallas import tpu as pltpu

HP = 128  # padded hidden width == lane width


def _round_up(x, m):
    return ((x + m - 1) // m) * m


def _cdiv(a, b):
    return (a + b - 1) // b


def _choose_tiling(B, max_tile=2048):
    """Pick (tile_b, num_tiles): tile_b a multiple of 128 (full-lane stores),
    num_tiles even when >1 (clean split over v7x's two TensorCores), minimal pad."""
    b128 = _round_up(B, 128)
    if b128 <= 256:
        return b128, 1
    n = max(2, _cdiv(b128, max_tile))
    if n % 2:
        n += 1
    tb = _round_up(_cdiv(B, n), 128)
    return tb, n


def _make_kernel(k1, action_dim):
    def kernel(obs_ref, params_ref, out_ref):
        # obs_ref: (k1, tb) bf16, rows = [features..., 1.0, 0...]; batch on lanes.
        x = obs_ref[...]

        slab = params_ref[0:HP, :]                          # (HP, 128) f32
        w1t = slab[:, :k1].astype(jnp.bfloat16)             # (HP, k1) = [W1^T | b1 | 0..]
        b2 = slab[:, k1:k1 + 1]                             # (HP, 1) f32
        b3 = slab[:, k1 + 1:k1 + 2]                         # (HP, 1) f32 (bounds folded in)
        w2t = params_ref[HP:2 * HP, :].astype(jnp.bfloat16)       # (HP, HP)
        w3t = params_ref[2 * HP:3 * HP, :].astype(jnp.bfloat16)   # (HP, HP) (bounds folded)

        # b1 is folded into the fc1 matmul by the ones row of x.
        h1 = jnp.tanh(jnp.dot(w1t, x, preferred_element_type=jnp.float32))
        h2 = jnp.tanh(jnp.dot(w2t, h1.astype(jnp.bfloat16),
                              preferred_element_type=jnp.float32) + b2)
        a = jnp.dot(w3t, h2.astype(jnp.bfloat16),
                    preferred_element_type=jnp.float32) + b3        # (HP, tb) f32

        out_ref[...] = a[:action_dim, :]                    # lane-dense (action_dim, tb)

    return kernel


def pack_params(w1, b1, w2, b2, w3, b3, lower_bound, upper_bound):
    """Fold action bounds into layer 3 and pack all params (transposed) into one
    (3*HP, 128) f32 buffer.  Biases stay f32; weights are bf16-cast in-kernel."""
    obs_dim, hidden = w1.shape
    action_dim = w3.shape[1]
    k1 = _round_up(obs_dim + 1, 16)   # fc1 contraction width: features + ones row
    assert hidden <= HP and action_dim <= HP and k1 + 2 <= HP

    lb = jnp.reshape(jnp.asarray(lower_bound, jnp.float32), (action_dim,))
    ub = jnp.reshape(jnp.asarray(upper_bound, jnp.float32), (action_dim,))
    s = (ub - lb) * 0.5
    w3f = w3.astype(jnp.float32) * s[None, :]                     # (hidden, action_dim)
    b3f = jnp.reshape(b3, (action_dim,)).astype(jnp.float32) * s + s + lb

    P = jnp.zeros((3 * HP, HP), jnp.float32)
    # Section A (rows 0:HP): lanes [0:obs_dim) = W1^T, lane obs_dim = b1 (folded via
    # the ones row), lane k1 = b2, lane k1+1 = b3' (bounds folded).
    P = P.at[:hidden, :obs_dim].set(w1.astype(jnp.float32).T)
    P = P.at[:hidden, obs_dim].set(jnp.reshape(b1, (hidden,)).astype(jnp.float32))
    P = P.at[:hidden, k1].set(jnp.reshape(b2, (hidden,)).astype(jnp.float32))
    P = P.at[:action_dim, k1 + 1].set(b3f)
    # Section B (rows HP:2HP): W2^T.  Section C (rows 2HP:3HP): (W3 * s)^T.
    P = P.at[HP:HP + hidden, :hidden].set(w2.astype(jnp.float32).T)
    P = P.at[2 * HP:2 * HP + action_dim, :hidden].set(w3f.T)

    meta = dict(obs_dim=obs_dim, action_dim=action_dim, k1=k1)
    return P, meta


def pi_network_forward(obs, packed_params, meta, *, max_tile=2048):
    """obs: (B, obs_dim) f32 -> actions (B, action_dim) f32."""
    obs = jnp.asarray(obs, jnp.float32)
    B, obs_dim = obs.shape
    assert obs_dim == meta["obs_dim"]
    action_dim = meta["action_dim"]
    k1 = meta["k1"]

    tb, n_tiles = _choose_tiling(B, max_tile)
    pb = tb * n_tiles

    # Transposed, lane-dense obs block: (k1, pb) with a constant ones row so fc1's
    # bias is folded into the matmul.  Cast to bf16 for the MXU operand.
    x_t = jnp.zeros((k1, pb), jnp.float32)
    x_t = x_t.at[:obs_dim, :B].set(obs.T)
    x_t = x_t.at[obs_dim, :].set(1.0)
    x_t = x_t.astype(jnp.bfloat16)

    kernel = _make_kernel(k1, action_dim)

    out_t = pl.pallas_call(
        kernel,
        out_shape=jax.ShapeDtypeStruct((action_dim, pb), jnp.float32),
        grid=(n_tiles,),
        in_specs=[
            pl.BlockSpec((k1, tb), lambda i: (0, i)),               # obs: lane-tiled batch
            pl.BlockSpec(packed_params.shape, lambda i: (0, 0)),    # params: grid-invariant, VMEM-resident
        ],
        out_specs=pl.BlockSpec((action_dim, tb), lambda i: (0, i)), # lane-dense output
        compiler_params=pltpu.CompilerParams(dimension_semantics=("parallel",)),
    )(x_t, packed_params)

    return out_t[:, :B].T                                           # (B, action_dim)


def init_params(key, obs_dim, hidden, action_dim):
    """torch-Linear-style uniform(-1/sqrt(fan_in), 1/sqrt(fan_in)) init, weights pre-transposed."""
    ks = jax.random.split(key, 6)

    def linear(kw, kb, fan_in, fan_out):
        bound = 1.0 / jnp.sqrt(jnp.float32(fan_in))
        w = jax.random.uniform(kw, (fan_in, fan_out), jnp.float32, -bound, bound)
        b = jax.random.uniform(kb, (1, fan_out), jnp.float32, -bound, bound)
        return w, b

    w1, b1 = linear(ks[0], ks[1], obs_dim, hidden)
    w2, b2 = linear(ks[2], ks[3], hidden, hidden)
    w3, b3 = linear(ks[4], ks[5], hidden, action_dim)
    return w1, b1, w2, b2, w3, b3


def reference_forward(obs, w1, b1, w2, b2, w3, b3, lb, ub):
    dot = lambda a, b: jnp.dot(a, b, precision=jax.lax.Precision.HIGHEST)
    y = jnp.tanh(dot(obs, w1) + b1)
    y = jnp.tanh(dot(y, w2) + b2)
    a = dot(y, w3) + b3
    return (a + 1.0) * (ub - lb) / 2.0 + lb


if __name__ == "__main__":
    # MountainCarContinuous-v0 policy: obs_dim=2, action_dim=1.
    # Asymmetric bounds so the folded rescale is exercised.
    obs_dim, hidden, action_dim = 2, 64, 1
    lower_bound = jnp.full((1, action_dim), -2.0, dtype=jnp.float32)
    upper_bound = jnp.full((1, action_dim), 3.0, dtype=jnp.float32)

    key = jax.random.PRNGKey(0)
    k_obs_small, k_obs_big, k_params = jax.random.split(key, 3)

    w1, b1, w2, b2, w3, b3 = init_params(k_params, obs_dim, hidden, action_dim)
    packed, meta = pack_params(w1, b1, w2, b2, w3, b3, lower_bound, upper_bound)

    # Tolerances are for bf16 MXU operands (f32 accumulation, f32 biases/tanh).
    ATOL = 5e-2
    RTOL = 5e-2

    # Small-batch path (single 128-lane tile).
    obs = jax.random.normal(k_obs_small, (8, obs_dim), dtype=jnp.float32)
    out = jax.block_until_ready(pi_network_forward(obs, packed, meta))
    ref = reference_forward(obs, w1, b1, w2, b2, w3, b3, lower_bound, upper_bound)
    assert out.shape == (8, action_dim)
    assert jnp.allclose(out, ref, atol=ATOL, rtol=RTOL), "small-batch mismatch vs reference"

    # Rollout-sized batch: exercises batch padding, the even multi-tile parallel grid
    # (2 x 1280 for B=2500), VMEM-resident weights and the lane-dense output path.
    obs_big = jax.random.normal(k_obs_big, (2500, obs_dim), dtype=jnp.float32)
    out_big = jax.block_until_ready(pi_network_forward(obs_big, packed, meta))
    ref_big = reference_forward(obs_big, w1, b1, w2, b2, w3, b3, lower_bound, upper_bound)
    assert out_big.shape == (2500, action_dim)
    assert jnp.allclose(out_big, ref_big, atol=ATOL, rtol=RTOL), "batched mismatch vs reference"

    print("KERNEL_OK")
</pallas_src>

<mosaic_0001>
module attributes {stable_mosaic.version = 11 : i64} {
  func.func @kernel(%arg0: i32, %arg1: memref<16x128xbf16, #tpu.memory_space<vmem>>, %arg2: memref<384x128xf32, #tpu.memory_space<vmem>>, %arg3: memref<1x128xf32, #tpu.memory_space<vmem>>) attributes {dimension_semantics = [#tpu.dimension_semantics<parallel>], iteration_bounds = array<i64: 1>, scalar_prefetch = 0 : i64, scratch_operands = 0 : i64, tpu.core_type = #tpu.core_type<tc>, window_params = [{transform_indices = @transform_0, window_bounds = array<i64: 16, 128>}, {pipeline_mode = #tpu.pipeline_mode<synchronous>, transform_indices = @transform_1, window_bounds = array<i64: 384, 128>}, {transform_indices = @transform_2, window_bounds = array<i64: 1, 128>}]} {
    %c0 = arith.constant 0 : index
    %c0_0 = arith.constant 0 : index
    %0 = vector.load %arg1[%c0, %c0_0] : memref<16x128xbf16, #tpu.memory_space<vmem>>, vector<16x128xbf16>
    %c0_1 = arith.constant 0 : index
    %c0_2 = arith.constant 0 : index
    %1 = vector.load %arg2[%c0_1, %c0_2] : memref<384x128xf32, #tpu.memory_space<vmem>>, vector<128x128xf32>
    %2 = vector.extract_strided_slice %1 {offsets = [0, 0], sizes = [128, 16], strides = [1, 1]} : vector<128x128xf32> to vector<128x16xf32>
    %3 = arith.truncf %2 : vector<128x16xf32> to vector<128x16xbf16>
    %4 = vector.extract_strided_slice %1 {offsets = [0, 16], sizes = [128, 1], strides = [1, 1]} : vector<128x128xf32> to vector<128x1xf32>
    %5 = vector.extract_strided_slice %1 {offsets = [0, 17], sizes = [128, 1], strides = [1, 1]} : vector<128x128xf32> to vector<128x1xf32>
    %c128 = arith.constant 128 : index
    %c0_3 = arith.constant 0 : index
    %6 = vector.load %arg2[%c128, %c0_3] : memref<384x128xf32, #tpu.memory_space<vmem>>, vector<128x128xf32>
    %7 = arith.truncf %6 : vector<128x128xf32> to vector<128x128xbf16>
    %c256 = arith.constant 256 : index
    %c0_4 = arith.constant 0 : index
    %8 = vector.load %arg2[%c256, %c0_4] : memref<384x128xf32, #tpu.memory_space<vmem>>, vector<128x128xf32>
    %9 = arith.truncf %8 : vector<128x128xf32> to vector<128x128xbf16>
    %cst = arith.constant dense<0.000000e+00> : vector<128x128xf32>
    %10 = tpu.matmul %3, %0, %cst {dimension_numbers = #tpu.dot_dimension_numbers<[1], [0], [0], [1], [0, 0, 1, 1], [], []>} : vector<128x16xbf16>, vector<16x128xbf16>, vector<128x128xf32> -> vector<128x128xf32>
    %11 = math.tanh %10 : vector<128x128xf32>
    %12 = arith.truncf %11 : vector<128x128xf32> to vector<128x128xbf16>
    %cst_5 = arith.constant dense<0.000000e+00> : vector<128x128xf32>
    %13 = tpu.matmul %7, %12, %cst_5 {dimension_numbers = #tpu.dot_dimension_numbers<[1], [0], [0], [1], [0, 0, 1, 1], [], []>} : vector<128x128xbf16>, vector<128x128xbf16>, vector<128x128xf32> -> vector<128x128xf32>
    %14 = vector.broadcast %4 : vector<128x1xf32> to vector<128x128xf32>
    %15 = arith.addf %13, %14 : vector<128x128xf32>
    %16 = math.tanh %15 : vector<128x128xf32>
    %17 = arith.truncf %16 : vector<128x128xf32> to vector<128x128xbf16>
    %cst_6 = arith.constant dense<0.000000e+00> : vector<128x128xf32>
    %18 = tpu.matmul %9, %17, %cst_6 {dimension_numbers = #tpu.dot_dimension_numbers<[1], [0], [0], [1], [0, 0, 1, 1], [], []>} : vector<128x128xbf16>, vector<128x128xbf16>, vector<128x128xf32> -> vector<128x128xf32>
    %19 = vector.broadcast %5 : vector<128x1xf32> to vector<128x128xf32>
    %20 = arith.addf %18, %19 : vector<128x128xf32>
    %21 = vector.extract_strided_slice %20 {offsets = [0, 0], sizes = [1, 128], strides = [1, 1]} : vector<128x128xf32> to vector<1x128xf32>
    %c0_7 = arith.constant 0 : index
    %c0_8 = arith.constant 0 : index
    %22 = vector.load %arg3[%c0_7, %c0_8] : memref<1x128xf32, #tpu.memory_space<vmem>>, vector<1x128xf32>
    tpu.vector_store %arg3[%c0_7, %c0_8], %21 {strides = array<i32>} : memref<1x128xf32, #tpu.memory_space<vmem>>, vector<1x128xf32>,
    return
  }
  func.func @transform_0(%arg0: i32) -> (i32, i32) {
    %c0_i32 = arith.constant 0 : i32
    %c0_i32_0 = arith.constant 0 : i32
    return %c0_i32, %arg0 : i32, i32
  }
  func.func @transform_1(%arg0: i32) -> (i32, i32) {
    %c0_i32 = arith.constant 0 : i32
    %c0_i32_0 = arith.constant 0 : i32
    %c0_i32_1 = arith.constant 0 : i32
    return %c0_i32, %c0_i32_0 : i32, i32
  }
  func.func @transform_2(%arg0: i32) -> (i32, i32) {
    %c0_i32 = arith.constant 0 : i32
    %c0_i32_0 = arith.constant 0 : i32
    return %c0_i32, %arg0 : i32, i32
  }
}

</mosaic_0001>

<llo_original>
// kernel: tpu_custom_call.1
$region0: #{tpu_custom_call.1}
  #allocation0 [shape = 'u32[]', space=smem, size = 0x4, offset = 0x4, fixed_abs, tag = 'smem constant byte address 0x4 - core index']
  #allocation1 [shape = 'u32[144,128]{1,0:T(1,128)}', space=vmem, size = 0x12000, scoped, tag = 'internal scratch']
  %s0 = inlined_call_operand.hbm [shape: bf16[16,128], index: 0, kind: input, shape index: {}]
  %s1 = inlined_call_operand.hbm [shape: f32[384,128], index: 1, kind: input, shape index: {}]
  %s2 = inlined_call_operand.hbm [shape: f32[1,128], index: 2, kind: output, shape index: {}]
  %s3 = sld [smem:[#allocation0]]
  $region26: #{tpu_custom_call.1} parent=0
    _
  %s5 = ssub.s32 1, %s3
  %s6 = scalar_select 0, %s5, %s3
  $region1: #{tpu_custom_call.1} parent=0
    #allocation2 [shape = 'u8[4096]{0}', space=vmem, size = 0x1000, scoped, tag = 'input window, operand 0, single buffered']
    #allocation3 [shape = 's32[1]{0}', space=sflag, size = 0x4, scoped, tag = 'scoped memory for tpu_custom_call.1']
    #allocation4 [shape = 's32[1]{0}', space=sflag, size = 0x4, scoped, tag = 'scoped memory for tpu_custom_call.1']
    #allocation5 [shape = 'u8[196608]{0}', space=vmem, size = 0x30000, scoped, tag = 'input window, operand 1, single buffered']
    #allocation6 [shape = 's32[1]{0}', space=sflag, size = 0x4, scoped, tag = 'scoped memory for tpu_custom_call.1']
    #allocation7 [shape = 'u8[512]{0}', space=vmem, size = 0x400, scoped, tag = 'output window, operand 0, single buffered']
    %7 = vsyncpa [#allocation3], 0
    %8 = vsyncpa [#allocation6], 0
    %9 = vsyncpa [#allocation4], 0
    // Predicated region
    $region2: #{tpu_custom_call.1} parent=1 // pred_check
      _
    $region3: #{tpu_custom_call.1} parent=1 // pred_check_branch
      %11 = sbr.rel (0) target = $region5
    $region4: #{tpu_custom_call.1} parent=1 // pred_region
      %s13 = ssub.s32 128, 128
      %14 = vsyncadd [#allocation3], %s13
      %s15 = sshll.u32 [#allocation2], 4
      %s16 = int_to_ptr.vmem [resolvable:$true] %s15
      %21 = dma.hbm_to_vmem [thread:$0]  %s0, 128, %s16, [#allocation3], 64, 64, 4
    $region5: #{tpu_custom_call.1} parent=1 // pred_fallthru
      _
    // Predicated region
    $region6: #{tpu_custom_call.1} parent=1 // pred_check
      _
    $region7: #{tpu_custom_call.1} parent=1 // pred_check_branch
      %23 = sbr.rel (0) target = $region9
    $region8: #{tpu_custom_call.1} parent=1 // pred_region
      %s25 = ssub.s32 6144, 6144
      %26 = vsyncadd [#allocation6], %s25
      %s27 = sshll.u32 [#allocation5], 4
      %s28 = int_to_ptr.vmem [resolvable:$true] %s27
      %33 = dma.hbm_to_vmem [thread:$0]  %s1, 6144, %s28, [#allocation6], 128, 128, 8
    $region9: #{tpu_custom_call.1} parent=1 // pred_fallthru
      _
    // Predicated region
    $region10: #{tpu_custom_call.1} parent=1 // pred_check
      _
    $region11: #{tpu_custom_call.1} parent=1 // pred_check_branch
      %35 = sbr.rel (0) target = $region13
    $region12: #{tpu_custom_call.1} parent=1 // pred_region
      %36 = dma.done [#allocation3], 128
    $region13: #{tpu_custom_call.1} parent=1 // pred_fallthru
      _
    // Predicated region
    $region14: #{tpu_custom_call.1} parent=1 // pred_check
      _
    $region15: #{tpu_custom_call.1} parent=1 // pred_check_branch
      %38 = sbr.rel (0) target = $region17
    $region16: #{tpu_custom_call.1} parent=1 // pred_region
      %39 = dma.done [#allocation6], 6144
    $region17: #{tpu_custom_call.1} parent=1 // pred_fallthru
      _
    %v41 = vld [vmem:[#allocation2] sm:$0xf]
    %v42 = vld [vmem:[#allocation2 + $0x4] sm:$0xf]
    %v43 = vld [vmem:[#allocation5] sm:$0xff]
    %v44 = vld [vmem:[#allocation5 + $0x8] sm:$0xff]
    %v45 = vld [vmem:[#allocation5 + $0x10] sm:$0xff]
    %v46 = vld [vmem:[#allocation5 + $0x18] sm:$0xff]
    %v47 = vld [vmem:[#allocation5 + $0x20] sm:$0xff]
    %v48 = vld [vmem:[#allocation5 + $0x28] sm:$0xff]
    %v49 = vld [vmem:[#allocation5 + $0x30] sm:$0xff]
    %v50 = vld [vmem:[#allocation5 + $0x38] sm:$0xff]
    %v51 = vld [vmem:[#allocation5 + $0x40] sm:$0xff]
    %v52 = vld [vmem:[#allocation5 + $0x48] sm:$0xff]
    %v53 = vld [vmem:[#allocation5 + $0x50] sm:$0xff]
    %v54 = vld [vmem:[#allocation5 + $0x58] sm:$0xff]
    %v55 = vld [vmem:[#allocation5 + $0x60] sm:$0xff]
    %v56 = vld [vmem:[#allocation5 + $0x68] sm:$0xff]
    %v57 = vld [vmem:[#allocation5 + $0x70] sm:$0xff]
    %v58 = vld [vmem:[#allocation5 + $0x78] sm:$0xff]
    %v59 = vpack.c.bf16 %v44, %v43
    %v60 = vpack.c.bf16 %v46, %v45
    %v61 = vpack.c.bf16 %v48, %v47
    %v62 = vpack.c.bf16 %v50, %v49
    %v63 = vpack.c.bf16 %v52, %v51
    %v64 = vpack.c.bf16 %v54, %v53
    %v65 = vpack.c.bf16 %v56, %v55
    %v66 = vpack.c.bf16 %v58, %v57
    %v67 = vld [vmem:[#allocation5 + $0x80] sm:$0xff]
    %v68 = vld [vmem:[#allocation5 + $0x88] sm:$0xff]
    %v69 = vld [vmem:[#allocation5 + $0x90] sm:$0xff]
    %v70 = vld [vmem:[#allocation5 + $0x98] sm:$0xff]
    %v71 = vld [vmem:[#allocation5 + $0xa0] sm:$0xff]
    %v72 = vld [vmem:[#allocation5 + $0xa8] sm:$0xff]
    %v73 = vld [vmem:[#allocation5 + $0xb0] sm:$0xff]
    %v74 = vld [vmem:[#allocation5 + $0xb8] sm:$0xff]
    %v75 = vld [vmem:[#allocation5 + $0xc0] sm:$0xff]
    %v76 = vld [vmem:[#allocation5 + $0xc8] sm:$0xff]
    %v77 = vld [vmem:[#allocation5 + $0xd0] sm:$0xff]
    %v78 = vld [vmem:[#allocation5 + $0xd8] sm:$0xff]
    %v79 = vld [vmem:[#allocation5 + $0xe0] sm:$0xff]
    %v80 = vld [vmem:[#allocation5 + $0xe8] sm:$0xff]
    %v81 = vld [vmem:[#allocation5 + $0xf0] sm:$0xff]
    %v82 = vld [vmem:[#allocation5 + $0xf8] sm:$0xff]
    %v83 = vpack.c.bf16 %v68, %v67
    %v84 = vpack.c.bf16 %v70, %v69
    %v85 = vpack.c.bf16 %v72, %v71
    %v86 = vpack.c.bf16 %v74, %v73
    %v87 = vpack.c.bf16 %v76, %v75
    %v88 = vpack.c.bf16 %v78, %v77
    %v89 = vpack.c.bf16 %v80, %v79
    %v90 = vpack.c.bf16 %v82, %v81
    %v91 = vld [vmem:[#allocation5 + $0x100] sm:$0xff]
    %v92 = vld [vmem:[#allocation5 + $0x108] sm:$0xff]
    %v93 = vld [vmem:[#allocation5 + $0x110] sm:$0xff]
    %v94 = vld [vmem:[#allocation5 + $0x118] sm:$0xff]
    %v95 = vld [vmem:[#allocation5 + $0x120] sm:$0xff]
    %v96 = vld [vmem:[#allocation5 + $0x128] sm:$0xff]
    %v97 = vld [vmem:[#allocation5 + $0x130] sm:$0xff]
    %v98 = vld [vmem:[#allocation5 + $0x138] sm:$0xff]
    %v99 = vld [vmem:[#allocation5 + $0x140] sm:$0xff]
    %v100 = vld [vmem:[#allocation5 + $0x148] sm:$0xff]
    %v101 = vld [vmem:[#allocation5 + $0x150] sm:$0xff]
    %v102 = vld [vmem:[#allocation5 + $0x158] sm:$0xff]
    %v103 = vld [vmem:[#allocation5 + $0x160] sm:$0xff]
    %v104 = vld [vmem:[#allocation5 + $0x168] sm:$0xff]
    %v105 = vld [vmem:[#allocation5 + $0x170] sm:$0xff]
    %v106 = vld [vmem:[#allocation5 + $0x178] sm:$0xff]
    %v107 = vpack.c.bf16 %v92, %v91
    %v108 = vpack.c.bf16 %v94, %v93
    %v109 = vpack.c.bf16 %v96, %v95
    %v110 = vpack.c.bf16 %v98, %v97
    %v111 = vpack.c.bf16 %v100, %v99
    %v112 = vpack.c.bf16 %v102, %v101
    %v113 = vpack.c.bf16 %v104, %v103
    %v114 = vpack.c.bf16 %v106, %v105
    %v117 = vunpack.c.l.b16 %v41
    %v118 = vunpack.c.l.b16 %v42
    %v119 = vpack.c.b16 %v118, %v117
    %vm121 = vcmask 130048
    %v123 = vsel %vm121, %v59, 0
    %v126 = vsel %vm121, %v60, 0
    %v129 = vsel %vm121, %v61, 0
    %v132 = vsel %vm121, %v62, 0
    %v135 = vsel %vm121, %v63, 0
    %v138 = vsel %vm121, %v64, 0
    %v141 = vsel %vm121, %v65, 0
    %v144 = vsel %vm121, %v66, 0
    %146 = vmatprep.subr.bf16.mxu0 0
    %147 = vmatpush1.bf16.msra.mxu0 0
    %148 = vmatprep.subr.bf16.mxu0 0
    %149 = vmatpush1.bf16.msra.mxu0 0
    %150 = vmatprep.subr.bf16.mxu0 0
    %151 = vmatpush1.bf16.msra.mxu0 0
    %152 = vmatprep.subr.bf16.mxu0 0
    %153 = vmatpush1.bf16.msra.mxu0 0
    %154 = vmatprep.subr.bf16.mxu0 0
    %155 = vmatpush1.bf16.msra.mxu0 0
    %156 = vmatprep.subr.bf16.mxu0 0
    %157 = vmatpush1.bf16.msra.mxu0 0
    %158 = vmatprep.subr.bf16.mxu0 0
    %159 = vmatpush1.bf16.msra.mxu0 0
    %160 = vmatprep.subr.bf16.mxu0 0
    %161 = vmatpush1.bf16.msra.mxu0 %v119
    %162 = vmatprep.subr.bf16.mxu0 0
    %163 = vmatpush2.bf16.msra.mxu0 0
    %164 = vmatprep.subr.bf16.mxu0 0
    %165 = vmatpush2.bf16.msra.mxu0 0
    %166 = vmatprep.subr.bf16.mxu0 0
    %167 = vmatpush2.bf16.msra.mxu0 0
    %168 = vmatprep.subr.bf16.mxu0 0
    %169 = vmatpush2.bf16.msra.mxu0 0
    %170 = vmatprep.subr.bf16.mxu0 0
    %171 = vmatpush2.bf16.msra.mxu0 0
    %172 = vmatprep.subr.bf16.mxu0 0
    %173 = vmatpush2.bf16.msra.mxu0 0
    %174 = vmatprep.subr.bf16.mxu0 0
    %175 = vmatpush2.bf16.msra.mxu0 0
    %176 = vmatprep.subr.bf16.mxu0 0
    %177 = vmatpush2.bf16.msra.mxu0 0
    %178 = vmatprep.mubr.bf16.mxu0 0
    %179 = vmatmul.mubr.bf16.gmra.mxu0 %v123
    %v180 = vpop.f32.mrf.mxu0
    %v181 = vadd.f32 0.0, %v180
    %v182 = vpop.f32.mrf.mxu0
    %v183 = vpop.f32.mrf.mxu0
    %v184 = vadd.f32 0.0, %v183
    %v185 = vpop.f32.mrf.mxu0
    %186 = vmatprep.mubr.bf16.mxu0 0
    %187 = vmatmul.mubr.bf16.gmra.mxu0 %v126
    %v188 = vpop.f32.mrf.mxu0
    %v189 = vadd.f32 0.0, %v188
    %v190 = vpop.f32.mrf.mxu0
    %v191 = vpop.f32.mrf.mxu0
    %v192 = vadd.f32 0.0, %v191
    %v193 = vpop.f32.mrf.mxu0
    %194 = vmatprep.mubr.bf16.mxu0 0
    %195 = vmatmul.mubr.bf16.gmra.mxu0 %v129
    %v196 = vpop.f32.mrf.mxu0
    %v197 = vadd.f32 0.0, %v196
    %v198 = vpop.f32.mrf.mxu0
    %v199 = vpop.f32.mrf.mxu0
    %v200 = vadd.f32 0.0, %v199
    %v201 = vpop.f32.mrf.mxu0
    %202 = vmatprep.mubr.bf16.mxu0 0
    %203 = vmatmul.mubr.bf16.gmra.mxu0 %v132
    %v204 = vpop.f32.mrf.mxu0
    %v205 = vadd.f32 0.0, %v204
    %v206 = vpop.f32.mrf.mxu0
    %v207 = vpop.f32.mrf.mxu0
    %v208 = vadd.f32 0.0, %v207
    %v209 = vpop.f32.mrf.mxu0
    %210 = vmatprep.mubr.bf16.mxu0 0
    %211 = vmatmul.mubr.bf16.gmra.mxu0 %v135
    %v212 = vpop.f32.mrf.mxu0
    %v213 = vadd.f32 0.0, %v212
    %v214 = vpop.f32.mrf.mxu0
    %v215 = vpop.f32.mrf.mxu0
    %v216 = vadd.f32 0.0, %v215
    %v217 = vpop.f32.mrf.mxu0
    %218 = vmatprep.mubr.bf16.mxu0 0
    %219 = vmatmul.mubr.bf16.gmra.mxu0 %v138
    %v220 = vpop.f32.mrf.mxu0
    %v221 = vadd.f32 0.0, %v220
    %v222 = vpop.f32.mrf.mxu0
    %v223 = vpop.f32.mrf.mxu0
    %v224 = vadd.f32 0.0, %v223
    %v225 = vpop.f32.mrf.mxu0
    %226 = vmatprep.mubr.bf16.mxu0 0
    %227 = vmatmul.mubr.bf16.gmra.mxu0 %v141
    %v228 = vpop.f32.mrf.mxu0
    %v229 = vadd.f32 0.0, %v228
    %v230 = vpop.f32.mrf.mxu0
    %v231 = vpop.f32.mrf.mxu0
    %v232 = vadd.f32 0.0, %v231
    %v233 = vpop.f32.mrf.mxu0
    %234 = vmatprep.mubr.bf16.mxu0 0
    %235 = vmatmul.mubr.bf16.gmra.mxu0 %v144
    %v236 = vpop.f32.mrf.mxu0
    %v237 = vadd.f32 0.0, %v236
    %v238 = vpop.f32.mrf.mxu0
    %v239 = vpop.f32.mrf.mxu0
    %v240 = vadd.f32 0.0, %v239
    %v241 = vpop.f32.mrf.mxu0
    %242 = vdwg.mxu0
    %v243 = vtanh.pop %v181
    %v244 = vtanh.pop %v184
    %v245 = vtanh.pop %v189
    %v246 = vtanh.pop %v192
    %v247 = vtanh.pop %v197
    %v248 = vtanh.pop %v200
    %v249 = vtanh.pop %v205
    %v250 = vtanh.pop %v208
    %v251 = vtanh.pop %v213
    %v252 = vtanh.pop %v216
    %v253 = vtanh.pop %v221
    %v254 = vtanh.pop %v224
    %v255 = vtanh.pop %v229
    %v256 = vtanh.pop %v232
    %v257 = vtanh.pop %v237
    %v258 = vtanh.pop %v240
    %v259 = vpack.c.bf16 %v244, %v243
    %v260 = vpack.c.bf16 %v246, %v245
    %v261 = vpack.c.bf16 %v248, %v247
    %v262 = vpack.c.bf16 %v250, %v249
    %v263 = vpack.c.bf16 %v252, %v251
    %v264 = vpack.c.bf16 %v254, %v253
    %v265 = vpack.c.bf16 %v256, %v255
    %v266 = vpack.c.bf16 %v258, %v257
    %268 = vset.pattern.permute.xlu0 16
    %269 = vperm.xlu0 %268, %v43
    %v270 = vpop.permute.xlu0 %269
    %273 = vset.pattern.permute.xlu0 16
    %274 = vperm.xlu0 %273, %v44
    %v275 = vpop.permute.xlu0 %274
    %278 = vset.pattern.permute.xlu0 16
    %279 = vperm.xlu0 %278, %v45
    %v280 = vpop.permute.xlu0 %279
    %283 = vset.pattern.permute.xlu0 16
    %284 = vperm.xlu0 %283, %v46
    %v285 = vpop.permute.xlu0 %284
    %288 = vset.pattern.permute.xlu0 16
    %289 = vperm.xlu0 %288, %v47
    %v290 = vpop.permute.xlu0 %289
    %293 = vset.pattern.permute.xlu0 16
    %294 = vperm.xlu0 %293, %v48
    %v295 = vpop.permute.xlu0 %294
    %298 = vset.pattern.permute.xlu0 16
    %299 = vperm.xlu0 %298, %v49
    %v300 = vpop.permute.xlu0 %299
    %303 = vset.pattern.permute.xlu0 16
    %304 = vperm.xlu0 %303, %v50
    %v305 = vpop.permute.xlu0 %304
    %308 = vset.pattern.permute.xlu0 16
    %309 = vperm.xlu0 %308, %v51
    %v310 = vpop.permute.xlu0 %309
    %313 = vset.pattern.permute.xlu0 16
    %314 = vperm.xlu0 %313, %v52
    %v315 = vpop.permute.xlu0 %314
    %318 = vset.pattern.permute.xlu0 16
    %319 = vperm.xlu0 %318, %v53
    %v320 = vpop.permute.xlu0 %319
    %323 = vset.pattern.permute.xlu0 16
    %324 = vperm.xlu0 %323, %v54
    %v325 = vpop.permute.xlu0 %324
    %328 = vset.pattern.permute.xlu0 16
    %329 = vperm.xlu0 %328, %v55
    %v330 = vpop.permute.xlu0 %329
    %333 = vset.pattern.permute.xlu0 16
    %334 = vperm.xlu0 %333, %v56
    %v335 = vpop.permute.xlu0 %334
    %338 = vset.pattern.permute.xlu0 16
    %339 = vperm.xlu0 %338, %v57
    %v340 = vpop.permute.xlu0 %339
    %343 = vset.pattern.permute.xlu0 16
    %344 = vperm.xlu0 %343, %v58
    %v345 = vpop.permute.xlu0 %344
    %347 = vmatprep.subr.bf16.mxu0 0
    %348 = vmatpush1.bf16.msra.mxu0 %v266
    %349 = vmatprep.subr.bf16.mxu0 0
    %350 = vmatpush1.bf16.msra.mxu0 %v265
    %351 = vmatprep.subr.bf16.mxu0 0
    %352 = vmatpush1.bf16.msra.mxu0 %v264
    %353 = vmatprep.subr.bf16.mxu0 0
    %354 = vmatpush1.bf16.msra.mxu0 %v263
    %355 = vmatprep.subr.bf16.mxu0 0
    %356 = vmatpush1.bf16.msra.mxu0 %v262
    %357 = vmatprep.subr.bf16.mxu0 0
    %358 = vmatpush1.bf16.msra.mxu0 %v261
    %359 = vmatprep.subr.bf16.mxu0 0
    %360 = vmatpush1.bf16.msra.mxu0 %v260
    %361 = vmatprep.subr.bf16.mxu0 0
    %362 = vmatpush1.bf16.msra.mxu0 %v259
    %363 = vmatprep.subr.bf16.mxu0 0
    %364 = vmatpush2.bf16.msra.mxu0 0
    %365 = vmatprep.subr.bf16.mxu0 0
    %366 = vmatpush2.bf16.msra.mxu0 0
    %367 = vmatprep.subr.bf16.mxu0 0
    %368 = vmatpush2.bf16.msra.mxu0 0
    %369 = vmatprep.subr.bf16.mxu0 0
    %370 = vmatpush2.bf16.msra.mxu0 0
    %371 = vmatprep.subr.bf16.mxu0 0
    %372 = vmatpush2.bf16.msra.mxu0 0
    %373 = vmatprep.subr.bf16.mxu0 0
    %374 = vmatpush2.bf16.msra.mxu0 0
    %375 = vmatprep.subr.bf16.mxu0 0
    %376 = vmatpush2.bf16.msra.mxu0 0
    %377 = vmatprep.subr.bf16.mxu0 0
    %378 = vmatpush2.bf16.msra.mxu0 0
    %379 = vmatprep.mubr.bf16.mxu0 0
    %380 = vmatmul.mubr.bf16.gmra.mxu0 %v83
    %v381 = vpop.f32.mrf.mxu0
    %v382 = vadd.f32 %v270, %v381
    %v383 = vpop.f32.mrf.mxu0
    %v384 = vpop.f32.mrf.mxu0
    %v385 = vadd.f32 %v275, %v384
    %v386 = vpop.f32.mrf.mxu0
    %387 = vmatprep.mubr.bf16.mxu0 0
    %388 = vmatmul.mubr.bf16.gmra.mxu0 %v84
    %v389 = vpop.f32.mrf.mxu0
    %v390 = vadd.f32 %v280, %v389
    %v391 = vpop.f32.mrf.mxu0
    %v392 = vpop.f32.mrf.mxu0
    %v393 = vadd.f32 %v285, %v392
    %v394 = vpop.f32.mrf.mxu0
    %395 = vmatprep.mubr.bf16.mxu0 0
    %396 = vmatmul.mubr.bf16.gmra.mxu0 %v85
    %v397 = vpop.f32.mrf.mxu0
    %v398 = vadd.f32 %v290, %v397
    %v399 = vpop.f32.mrf.mxu0
    %v400 = vpop.f32.mrf.mxu0
    %v401 = vadd.f32 %v295, %v400
    %v402 = vpop.f32.mrf.mxu0
    %403 = vmatprep.mubr.bf16.mxu0 0
    %404 = vmatmul.mubr.bf16.gmra.mxu0 %v86
    %v405 = vpop.f32.mrf.mxu0
    %v406 = vadd.f32 %v300, %v405
    %v407 = vpop.f32.mrf.mxu0
    %v408 = vpop.f32.mrf.mxu0
    %v409 = vadd.f32 %v305, %v408
    %v410 = vpop.f32.mrf.mxu0
    %411 = vmatprep.mubr.bf16.mxu0 0
    %412 = vmatmul.mubr.bf16.gmra.mxu0 %v87
    %v413 = vpop.f32.mrf.mxu0
    %v414 = vadd.f32 %v310, %v413
    %v415 = vpop.f32.mrf.mxu0
    %v416 = vpop.f32.mrf.mxu0
    %v417 = vadd.f32 %v315, %v416
    %v418 = vpop.f32.mrf.mxu0
    %419 = vmatprep.mubr.bf16.mxu0 0
    %420 = vmatmul.mubr.bf16.gmra.mxu0 %v88
    %v421 = vpop.f32.mrf.mxu0
    %v422 = vadd.f32 %v320, %v421
    %v423 = vpop.f32.mrf.mxu0
    %v424 = vpop.f32.mrf.mxu0
    %v425 = vadd.f32 %v325, %v424
    %v426 = vpop.f32.mrf.mxu0
    %427 = vmatprep.mubr.bf16.mxu0 0
    %428 = vmatmul.mubr.bf16.gmra.mxu0 %v89
    %v429 = vpop.f32.mrf.mxu0
    %v430 = vadd.f32 %v330, %v429
    %v431 = vpop.f32.mrf.mxu0
    %v432 = vpop.f32.mrf.mxu0
    %v433 = vadd.f32 %v335, %v432
    %v434 = vpop.f32.mrf.mxu0
    %435 = vmatprep.mubr.bf16.mxu0 0
    %436 = vmatmul.mubr.bf16.gmra.mxu0 %v90
    %v437 = vpop.f32.mrf.mxu0
    %v438 = vadd.f32 %v340, %v437
    %v439 = vpop.f32.mrf.mxu0
    %v440 = vpop.f32.mrf.mxu0
    %v441 = vadd.f32 %v345, %v440
    %v442 = vpop.f32.mrf.mxu0
    %443 = vdwg.mxu0
    %v444 = vtanh.pop %v382
    %v445 = vtanh.pop %v385
    %v446 = vtanh.pop %v390
    %v447 = vtanh.pop %v393
    %v448 = vtanh.pop %v398
    %v449 = vtanh.pop %v401
    %v450 = vtanh.pop %v406
    %v451 = vtanh.pop %v409
    %v452 = vtanh.pop %v414
    %v453 = vtanh.pop %v417
    %v454 = vtanh.pop %v422
    %v455 = vtanh.pop %v425
    %v456 = vtanh.pop %v430
    %v457 = vtanh.pop %v433
    %v458 = vtanh.pop %v438
    %v459 = vtanh.pop %v441
    %v460 = vpack.c.bf16 %v445, %v444
    %v461 = vpack.c.bf16 %v447, %v446
    %v462 = vpack.c.bf16 %v449, %v448
    %v463 = vpack.c.bf16 %v451, %v450
    %v464 = vpack.c.bf16 %v453, %v452
    %v465 = vpack.c.bf16 %v455, %v454
    %v466 = vpack.c.bf16 %v457, %v456
    %v467 = vpack.c.bf16 %v459, %v458
    %468 = vset.pattern.permute.xlu0 17
    %469 = vperm.xlu0 %468, %v43
    %v470 = vpop.permute.xlu0 %469
    %472 = vset.pattern.permute.xlu0 17
    %473 = vperm.xlu0 %472, %v44
    %v474 = vpop.permute.xlu0 %473
    %475 = vset.pattern.permute.xlu0 17
    %476 = vperm.xlu0 %475, %v45
    %v477 = vpop.permute.xlu0 %476
    %478 = vset.pattern.permute.xlu0 17
    %479 = vperm.xlu0 %478, %v46
    %v480 = vpop.permute.xlu0 %479
    %481 = vset.pattern.permute.xlu0 17
    %482 = vperm.xlu0 %481, %v47
    %v483 = vpop.permute.xlu0 %482
    %484 = vset.pattern.permute.xlu0 17
    %485 = vperm.xlu0 %484, %v48
    %v486 = vpop.permute.xlu0 %485
    %487 = vset.pattern.permute.xlu0 17
    %488 = vperm.xlu0 %487, %v49
    %v489 = vpop.permute.xlu0 %488
    %490 = vset.pattern.permute.xlu0 17
    %491 = vperm.xlu0 %490, %v50
    %v492 = vpop.permute.xlu0 %491
    %493 = vset.pattern.permute.xlu0 17
    %494 = vperm.xlu0 %493, %v51
    %v495 = vpop.permute.xlu0 %494
    %496 = vset.pattern.permute.xlu0 17
    %497 = vperm.xlu0 %496, %v52
    %v498 = vpop.permute.xlu0 %497
    %499 = vset.pattern.permute.xlu0 17
    %500 = vperm.xlu0 %499, %v53
    %v501 = vpop.permute.xlu0 %500
    %502 = vset.pattern.permute.xlu0 17
    %503 = vperm.xlu0 %502, %v54
    %v504 = vpop.permute.xlu0 %503
    %505 = vset.pattern.permute.xlu0 17
    %506 = vperm.xlu0 %505, %v55
    %v507 = vpop.permute.xlu0 %506
    %508 = vset.pattern.permute.xlu0 17
    %509 = vperm.xlu0 %508, %v56
    %v510 = vpop.permute.xlu0 %509
    %511 = vset.pattern.permute.xlu0 17
    %512 = vperm.xlu0 %511, %v57
    %v513 = vpop.permute.xlu0 %512
    %514 = vset.pattern.permute.xlu0 17
    %515 = vperm.xlu0 %514, %v58
    %v516 = vpop.permute.xlu0 %515
    %517 = vmatprep.subr.bf16.mxu0 0
    %518 = vmatpush1.bf16.msra.mxu0 %v467
    %519 = vmatprep.subr.bf16.mxu0 0
    %520 = vmatpush1.bf16.msra.mxu0 %v466
    %521 = vmatprep.subr.bf16.mxu0 0
    %522 = vmatpush1.bf16.msra.mxu0 %v465
    %523 = vmatprep.subr.bf16.mxu0 0
    %524 = vmatpush1.bf16.msra.mxu0 %v464
    %525 = vmatprep.subr.bf16.mxu0 0
    %526 = vmatpush1.bf16.msra.mxu0 %v463
    %527 = vmatprep.subr.bf16.mxu0 0
    %528 = vmatpush1.bf16.msra.mxu0 %v462
    %529 = vmatprep.subr.bf16.mxu0 0
    %530 = vmatpush1.bf16.msra.mxu0 %v461
    %531 = vmatprep.subr.bf16.mxu0 0
    %532 = vmatpush1.bf16.msra.mxu0 %v460
    %533 = vmatprep.subr.bf16.mxu0 0
    %534 = vmatpush2.bf16.msra.mxu0 0
    %535 = vmatprep.subr.bf16.mxu0 0
    %536 = vmatpush2.bf16.msra.mxu0 0
    %537 = vmatprep.subr.bf16.mxu0 0
    %538 = vmatpush2.bf16.msra.mxu0 0
    %539 = vmatprep.subr.bf16.mxu0 0
    %540 = vmatpush2.bf16.msra.mxu0 0
    %541 = vmatprep.subr.bf16.mxu0 0
    %542 = vmatpush2.bf16.msra.mxu0 0
    %543 = vmatprep.subr.bf16.mxu0 0
    %544 = vmatpush2.bf16.msra.mxu0 0
    %545 = vmatprep.subr.bf16.mxu0 0
    %546 = vmatpush2.bf16.msra.mxu0 0
    %547 = vmatprep.subr.bf16.mxu0 0
    %548 = vmatpush2.bf16.msra.mxu0 0
    %549 = vmatprep.mubr.bf16.mxu0 0
    %550 = vmatmul.mubr.bf16.gmra.mxu0 %v107
    %v551 = vpop.f32.mrf.mxu0
    %v552 = vadd.f32 %v470, %v551
    %v553 = vpop.f32.mrf.mxu0
    %v554 = vpop.f32.mrf.mxu0
    %v555 = vpop.f32.mrf.mxu0
    %556 = vmatprep.mubr.bf16.mxu0 0
    %557 = vmatmul.mubr.bf16.gmra.mxu0 %v108
    %v558 = vpop.f32.mrf.mxu0
    %v559 = vpop.f32.mrf.mxu0
    %v560 = vpop.f32.mrf.mxu0
    %v561 = vpop.f32.mrf.mxu0
    %562 = vmatprep.mubr.bf16.mxu0 0
    %563 = vmatmul.mubr.bf16.gmra.mxu0 %v109
    %v564 = vpop.f32.mrf.mxu0
    %v565 = vpop.f32.mrf.mxu0
    %v566 = vpop.f32.mrf.mxu0
    %v567 = vpop.f32.mrf.mxu0
    %568 = vmatprep.mubr.bf16.mxu0 0
    %569 = vmatmul.mubr.bf16.gmra.mxu0 %v110
    %v570 = vpop.f32.mrf.mxu0
    %v571 = vpop.f32.mrf.mxu0
    %v572 = vpop.f32.mrf.mxu0
    %v573 = vpop.f32.mrf.mxu0
    %574 = vmatprep.mubr.bf16.mxu0 0
    %575 = vmatmul.mubr.bf16.gmra.mxu0 %v111
    %v576 = vpop.f32.mrf.mxu0
    %v577 = vpop.f32.mrf.mxu0
    %v578 = vpop.f32.mrf.mxu0
    %v579 = vpop.f32.mrf.mxu0
    %580 = vmatprep.mubr.bf16.mxu0 0
    %581 = vmatmul.mubr.bf16.gmra.mxu0 %v112
    %v582 = vpop.f32.mrf.mxu0
    %v583 = vpop.f32.mrf.mxu0
    %v584 = vpop.f32.mrf.mxu0
    %v585 = vpop.f32.mrf.mxu0
    %586 = vmatprep.mubr.bf16.mxu0 0
    %587 = vmatmul.mubr.bf16.gmra.mxu0 %v113
    %v588 = vpop.f32.mrf.mxu0
    %v589 = vpop.f32.mrf.mxu0
    %v590 = vpop.f32.mrf.mxu0
    %v591 = vpop.f32.mrf.mxu0
    %592 = vmatprep.mubr.bf16.mxu0 0
    %593 = vmatmul.mubr.bf16.gmra.mxu0 %v114
    %v594 = vpop.f32.mrf.mxu0
    %v595 = vpop.f32.mrf.mxu0
    %v596 = vpop.f32.mrf.mxu0
    %v597 = vpop.f32.mrf.mxu0
    %598 = vdwg.mxu0
    %599 = vst [vmem:[#allocation7] sm:$0x1] %v552
    // Predicated region
    $region18: #{tpu_custom_call.1} parent=1 // pred_check
      _
    $region19: #{tpu_custom_call.1} parent=1 // pred_check_branch
      %601 = sbr.rel (0) target = $region21
    $region20: #{tpu_custom_call.1} parent=1 // pred_region
      %s603 = ssub.s32 16, 16
      %604 = vsyncadd [#allocation4], %s603
      %s606 = sshll.u32 [#allocation7], 4
      %s607 = int_to_ptr.vmem [resolvable:$true] %s606
      %609 = dma.vmem_to_hbm [thread:$0]  %s607, 16, %s2, [#allocation4]
    $region21: #{tpu_custom_call.1} parent=1 // pred_fallthru
      _
    // Predicated region
    $region22: #{tpu_custom_call.1} parent=1 // pred_check
      _
    $region23: #{tpu_custom_call.1} parent=1 // pred_check_branch
      %611 = sbr.rel (0) target = $region25
    $region24: #{tpu_custom_call.1} parent=1 // pred_region
      %612 = dma.done [#allocation4], 16
    $region25: #{tpu_custom_call.1} parent=1 // pred_fallthru
      _
    %613 = vsyncpa [#allocation3], 1
    %614 = vsyncpa [#allocation6], 1
    %615 = vsyncpa [#allocation4], 1

</llo_original>
